<compile_context>
chip_gen: v5e
topology: v5e:2x2
jax: 0.10.0
libtpu: 0.0.40
codegen_flags: <defaults>
</compile_context>

<pallas_src>
import functools

import jax
import jax.numpy as jnp
from jax import lax
from jax.experimental import pallas as pl
from jax.experimental.pallas import tpu as pltpu

# ---------------------------------------------------------------------------
# synthetic small BEATs config (real model: D=768, 12 layers, 12 heads ...)
# ---------------------------------------------------------------------------
CFG = dict(
    D=64,          # embed dim (self.embed_dim = 768 in the real module)
    H=4,           # attention heads
    FFN=256,       # feed-forward dim (4*D)
    L=2,           # transformer layers
    P=16,          # patch size of the Conv2d patch embedding (kernel=stride=16)
    CONV_K=16,     # positional conv kernel (real: 128)
    CONV_G=4,      # positional conv groups (real: 16)
    POOL=8,        # AvgPool1d(8, 8)
)

_PARALLEL_1D = pltpu.CompilerParams(dimension_semantics=("parallel",))


def _round_up(x, m):
    return (x + m - 1) // m * m


# ---------------------------------------------------------------------------
# Fused matmul kernels: matmul+bias [+gelu] [+residual*alpha] [+LayerNorm]
# ---------------------------------------------------------------------------
def _mm_kernel(x_ref, w_ref, b_ref, o_ref, *, activation):
    x = x_ref[...].astype(jnp.bfloat16)
    y = jnp.dot(x, w_ref[...], preferred_element_type=jnp.float32)
    y = y + b_ref[...]
    if activation == "gelu":
        y = jax.nn.gelu(y, approximate=True)
    o_ref[...] = y


def _mm_ln_kernel(x_ref, w_ref, b_ref, g_ref, be_ref, o_ref, *, eps):
    x = x_ref[...].astype(jnp.bfloat16)
    y = jnp.dot(x, w_ref[...], preferred_element_type=jnp.float32) + b_ref[...]
    mu = jnp.mean(y, axis=-1, keepdims=True)
    yc = y - mu
    var = jnp.mean(yc * yc, axis=-1, keepdims=True)
    o_ref[...] = yc * lax.rsqrt(var + eps) * g_ref[...] + be_ref[...]


def _mm_res_ln_kernel(x_ref, w_ref, b_ref, r_ref, g_ref, be_ref, o_ref,
                      *, alpha, eps):
    x = x_ref[...].astype(jnp.bfloat16)
    y = jnp.dot(x, w_ref[...], preferred_element_type=jnp.float32) + b_ref[...]
    y = r_ref[...] * alpha + y                      # deep-norm residual
    mu = jnp.mean(y, axis=-1, keepdims=True)
    yc = y - mu
    var = jnp.mean(yc * yc, axis=-1, keepdims=True)
    o_ref[...] = yc * lax.rsqrt(var + eps) * g_ref[...] + be_ref[...]


def fused_matmul(x, w, b, *, activation=None, residual=None, alpha=1.0,
                 ln=None, eps=1e-5, tm=256):
    """x:(M,K) @ w:(K,N) + b, with optional fused GELU / residual*alpha / LayerNorm.

    Rows are padded to a multiple of the (8-aligned) tile size instead of
    degenerating into one unpipelined mega-tile.
    """
    M, K = x.shape
    K2, N = w.shape
    assert K == K2
    tm = min(tm, _round_up(M, 8))
    Mp = _round_up(M, tm)
    xp = x if Mp == M else jnp.pad(x, ((0, Mp - M), (0, 0)))

    row_in_spec = pl.BlockSpec((tm, K), lambda i: (i, 0))
    w_spec = pl.BlockSpec((K, N), lambda i: (0, 0))
    vec_spec = pl.BlockSpec((1, N), lambda i: (0, 0))
    row_out_spec = pl.BlockSpec((tm, N), lambda i: (i, 0))

    flops = 2 * Mp * K * N
    transcendentals = Mp * N if activation == "gelu" else 0
    bytes_accessed = 4 * Mp * K + 2 * K * N + 4 * Mp * N + 4 * N

    if ln is None:
        kern = functools.partial(_mm_kernel, activation=activation)
        args = (xp, w, b.reshape(1, N))
        in_specs = [row_in_spec, w_spec, vec_spec]
    elif residual is None:
        gamma, beta = ln
        kern = functools.partial(_mm_ln_kernel, eps=eps)
        args = (xp, w, b.reshape(1, N), gamma.reshape(1, N), beta.reshape(1, N))
        in_specs = [row_in_spec, w_spec, vec_spec, vec_spec, vec_spec]
        bytes_accessed += 8 * N
    else:
        gamma, beta = ln
        rp = residual if Mp == M else jnp.pad(residual, ((0, Mp - M), (0, 0)))
        kern = functools.partial(_mm_res_ln_kernel, alpha=alpha, eps=eps)
        args = (xp, w, b.reshape(1, N), rp,
                gamma.reshape(1, N), beta.reshape(1, N))
        in_specs = [row_in_spec, w_spec, vec_spec, row_out_spec,
                    vec_spec, vec_spec]
        bytes_accessed += 4 * Mp * N + 8 * N

    out = pl.pallas_call(
        kern,
        out_shape=jax.ShapeDtypeStruct((Mp, N), jnp.float32),
        grid=(Mp // tm,),
        in_specs=in_specs,
        out_specs=row_out_spec,
        compiler_params=_PARALLEL_1D,
        cost_estimate=pl.CostEstimate(
            flops=flops,
            transcendentals=transcendentals,
            bytes_accessed=bytes_accessed),
    )(*args)
    return out[:M] if Mp != M else out


# ---------------------------------------------------------------------------
# Multi-head attention: one grid step per batch, all heads inside the block.
# Input is the fused QKV activation (B, N, 3D); no JAX-side head transposes.
# ---------------------------------------------------------------------------
def _attention_kernel(qkv_ref, o_ref, *, H, scale):
    x = qkv_ref[0]                                  # (N, 3D) f32 in VMEM
    D = x.shape[1] // 3
    dh = D // H
    outs = []
    for h in range(H):                              # H is small & static
        q = x[:, h * dh:(h + 1) * dh].astype(jnp.bfloat16)
        k = x[:, D + h * dh:D + (h + 1) * dh].astype(jnp.bfloat16)
        v = x[:, 2 * D + h * dh:2 * D + (h + 1) * dh].astype(jnp.bfloat16)
        s = jnp.dot(q, k.T, preferred_element_type=jnp.float32) * scale
        m = jnp.max(s, axis=-1, keepdims=True)
        p = jnp.exp(s - m)
        l = jnp.sum(p, axis=-1, keepdims=True)
        p = p * pl.reciprocal(l, approx=True)       # EUP approx reciprocal
        outs.append(jnp.dot(p.astype(jnp.bfloat16), v,
                            preferred_element_type=jnp.float32))
    o_ref[0] = jnp.concatenate(outs, axis=-1)


def mha_attention(qkv, H, scale):
    """qkv: (B, N, 3D) -> attention output (B, N, D)."""
    B, N, threeD = qkv.shape
    D = threeD // 3
    dh = D // H
    kern = functools.partial(_attention_kernel, H=H, scale=scale)
    return pl.pallas_call(
        kern,
        out_shape=jax.ShapeDtypeStruct((B, N, D), jnp.float32),
        grid=(B,),
        in_specs=[pl.BlockSpec((1, N, threeD), lambda i: (i, 0, 0))],
        out_specs=pl.BlockSpec((1, N, D), lambda i: (i, 0, 0)),
        compiler_params=_PARALLEL_1D,
        cost_estimate=pl.CostEstimate(
            flops=4 * B * H * N * N * dh,
            transcendentals=B * H * N * N,
            bytes_accessed=4 * B * N * (threeD + D)),
    )(qkv)


# ---------------------------------------------------------------------------
# Standalone LayerNorm (only used where there is no preceding matmul to fuse into)
# ---------------------------------------------------------------------------
def _layernorm_kernel(x_ref, g_ref, b_ref, o_ref, *, eps):
    x = x_ref[...]
    mu = jnp.mean(x, axis=-1, keepdims=True)
    xc = x - mu
    var = jnp.mean(xc * xc, axis=-1, keepdims=True)
    o_ref[...] = xc * lax.rsqrt(var + eps) * g_ref[...] + b_ref[...]


def layer_norm(x2d, gamma, beta, eps=1e-5, tm=256):
    M, D = x2d.shape
    tm = min(tm, _round_up(M, 8))
    Mp = _round_up(M, tm)
    xp = x2d if Mp == M else jnp.pad(x2d, ((0, Mp - M), (0, 0)))
    out = pl.pallas_call(
        functools.partial(_layernorm_kernel, eps=eps),
        out_shape=jax.ShapeDtypeStruct((Mp, D), jnp.float32),
        grid=(Mp // tm,),
        in_specs=[pl.BlockSpec((tm, D), lambda i: (i, 0)),
                  pl.BlockSpec((1, D), lambda i: (0, 0)),
                  pl.BlockSpec((1, D), lambda i: (0, 0))],
        out_specs=pl.BlockSpec((tm, D), lambda i: (i, 0)),
        compiler_params=_PARALLEL_1D,
    )(xp, gamma.reshape(1, D), beta.reshape(1, D))
    return out[:M] if Mp != M else out


# ---------------------------------------------------------------------------
# AvgPool1d(window, window) over tokens as a constant pooling-matrix matmul
# ---------------------------------------------------------------------------
def _pool_kernel(pm_ref, x_ref, o_ref):
    o_ref[0] = jnp.dot(pm_ref[...], x_ref[0], preferred_element_type=jnp.float32)


def avg_pool_time(x, window):
    """AvgPool1d(window, window) over the token axis of x:(B, N, D)."""
    B, N, D = x.shape
    Nout = N // window
    Nin = Nout * window
    x = x[:, :Nin]
    pool_mat = jnp.repeat(jnp.eye(Nout, dtype=jnp.float32), window, axis=1) / window
    return pl.pallas_call(
        _pool_kernel,
        out_shape=jax.ShapeDtypeStruct((B, Nout, D), jnp.float32),
        grid=(B,),
        in_specs=[pl.BlockSpec((Nout, Nin), lambda i: (0, 0)),
                  pl.BlockSpec((1, Nin, D), lambda i: (i, 0, 0))],
        out_specs=pl.BlockSpec((1, Nout, D), lambda i: (i, 0, 0)),
        compiler_params=_PARALLEL_1D,
    )(pool_mat, x)


# ---------------------------------------------------------------------------
# Plain-JAX glue (layout shuffles, grouped positional conv)
# ---------------------------------------------------------------------------
def pos_conv(x, w, b, groups):
    """Grouped Conv1d(D, D, k, pad=k//2, groups) + SamePad + GELU. x:(B,N,D)."""
    k = w.shape[-1]
    pad = k // 2
    xc = jnp.transpose(x, (0, 2, 1))  # (B, D, N)
    y = lax.conv_general_dilated(
        xc, w, window_strides=(1,), padding=[(pad, pad)],
        dimension_numbers=("NCH", "OIH", "NCH"),
        feature_group_count=groups)
    y = y + b[None, :, None]
    if k % 2 == 0:
        y = y[:, :, :-1]              # SamePad: drop trailing element
    y = jax.nn.gelu(y, approximate=True)
    return jnp.transpose(y, (0, 2, 1))


def encoder_layer(x2d, lp, B, N, D, H, alpha):
    """Post-LN (deep-norm) transformer block; x2d: (B*N, D)."""
    dh = D // H

    # --- self attention (fused QKV -> attention -> out-proj + residual + LN) ---
    residual = x2d
    qkv = fused_matmul(x2d, lp["wqkv"], lp["bqkv"])                 # (B*N, 3D)
    o = mha_attention(qkv.reshape(B, N, 3 * D), H, scale=dh ** -0.5)
    o = o.reshape(B * N, D)
    x2d = fused_matmul(o, lp["wo"], lp["bo"],
                       residual=residual, alpha=alpha,
                       ln=(lp["ln1_g"], lp["ln1_b"]))

    # --- feed forward (w1+gelu, then w2 + residual + LN) ---
    residual = x2d
    h = fused_matmul(x2d, lp["w1"], lp["b1"], activation="gelu")
    x2d = fused_matmul(h, lp["w2"], lp["b2"],
                       residual=residual, alpha=alpha,
                       ln=(lp["ln2_g"], lp["ln2_b"]))
    return x2d


def beats_forward(params, fbank):
    """Equivalent of BEATs.forward: extract_features + AvgPool1d(8,8) on time."""
    B, T, Fm = fbank.shape
    D, H, L, P = CFG["D"], CFG["H"], CFG["L"], CFG["P"]
    alpha = (2.0 * L) ** 0.25            # deep-norm residual scale
    tp, fp = T // P, Fm // P
    N = tp * fp

    # --- patch embedding: Conv2d(1, D, 16, stride=16) as gather + matmul+LN ---
    patches = (fbank.reshape(B, tp, P, fp, P)
                    .transpose(0, 1, 3, 2, 4)
                    .reshape(B * N, P * P))
    x = fused_matmul(patches, params["patch_w"], params["patch_b"],
                     ln=(params["ln_post_g"], params["ln_post_b"]))   # (B*N, D)
    # TODO(synk): post_extract_proj skipped (embed_dim == encoder_embed_dim here)

    # --- encoder: positional conv + LN + transformer layers ---
    x3 = x.reshape(B, N, D)
    x3 = x3 + pos_conv(x3, params["pos_conv_w"], params["pos_conv_b"], CFG["CONV_G"])
    x = layer_norm(x3.reshape(B * N, D), params["enc_ln_g"], params["enc_ln_b"])
    for lp in params["layers"]:
        x = encoder_layer(x, lp, B, N, D, H, alpha)
    feats = x.reshape(B, N, D)           # == encoder.extract_features(...)[0]

    # --- self.feat_mean: transpose -> AvgPool1d(8,8) -> transpose back ---
    return avg_pool_time(feats, CFG["POOL"])


# ---------------------------------------------------------------------------
# deterministic synthetic parameters (matmul weights stored in bf16)
# ---------------------------------------------------------------------------
def init_params(key):
    D, H, FFN, L, P = CFG["D"], CFG["H"], CFG["FFN"], CFG["L"], CFG["P"]
    ck, cg = CFG["CONV_K"], CFG["CONV_G"]
    keys = iter(jax.random.split(key, 128))

    def nrm(shape, scale=0.02, dtype=jnp.bfloat16):
        return (scale * jax.random.normal(next(keys), shape, jnp.float32)).astype(dtype)

    params = {
        "patch_w": nrm((P * P, D)),            # Conv2d(1,D,16,16) weight, flattened
        "patch_b": jnp.zeros((D,), jnp.float32),
        "ln_post_g": jnp.ones((D,), jnp.float32),
        "ln_post_b": jnp.zeros((D,), jnp.float32),
        "pos_conv_w": nrm((D, D // cg, ck), dtype=jnp.float32),   # grouped Conv1d (OIH)
        "pos_conv_b": jnp.zeros((D,), jnp.float32),
        "enc_ln_g": jnp.ones((D,), jnp.float32),
        "enc_ln_b": jnp.zeros((D,), jnp.float32),
        "layers": [],
    }
    for _ in range(L):
        params["layers"].append({
            # fused QKV projection: wq|wk|wv -> (D, 3D), bq|bk|bv -> (3D,)
            "wqkv": nrm((D, 3 * D)), "bqkv": jnp.zeros((3 * D,), jnp.float32),
            "wo": nrm((D, D)), "bo": jnp.zeros((D,), jnp.float32),
            "ln1_g": jnp.ones((D,), jnp.float32), "ln1_b": jnp.zeros((D,), jnp.float32),
            "w1": nrm((D, FFN)), "b1": jnp.zeros((FFN,), jnp.float32),
            "w2": nrm((FFN, D)), "b2": jnp.zeros((D,), jnp.float32),
            "ln2_g": jnp.ones((D,), jnp.float32), "ln2_b": jnp.zeros((D,), jnp.float32),
        })
    return params


if __name__ == "__main__":
    B, T, Fm = 2, 128, 128                      # 8 time-patches x 8 freq-patches = 64 tokens
    fbank = jax.random.normal(jax.random.PRNGKey(0), (B, T, Fm), jnp.float32)
    params = init_params(jax.random.PRNGKey(42))

    out = beats_forward(params, fbank)
    out = jax.block_until_ready(out)

    expected = (B, (T // CFG["P"]) * (Fm // CFG["P"]) // CFG["POOL"], CFG["D"])
    assert out.shape == expected, (out.shape, expected)
    assert out.dtype == jnp.float32
    assert bool(jnp.all(jnp.isfinite(out)))
    print("KERNEL_OK")
</pallas_src>

<mosaic_0001>
module attributes {stable_mosaic.version = 11 : i64} {
  func.func @_mm_ln_kernel(%arg0: i32, %arg1: memref<128x256xf32, #tpu.memory_space<vmem>>, %arg2: memref<256x64xbf16, #tpu.memory_space<vmem>>, %arg3: memref<1x64xf32, #tpu.memory_space<vmem>>, %arg4: memref<1x64xf32, #tpu.memory_space<vmem>>, %arg5: memref<1x64xf32, #tpu.memory_space<vmem>>, %arg6: memref<128x64xf32, #tpu.memory_space<vmem>>) attributes {dimension_semantics = [#tpu.dimension_semantics<parallel>], iteration_bounds = array<i64: 1>, scalar_prefetch = 0 : i64, scratch_operands = 0 : i64, tpu.core_type = #tpu.core_type<tc>, window_params = [{transform_indices = @transform_0, window_bounds = array<i64: 128, 256>}, {pipeline_mode = #tpu.pipeline_mode<synchronous>, transform_indices = @transform_1, window_bounds = array<i64: 256, 64>}, {pipeline_mode = #tpu.pipeline_mode<synchronous>, transform_indices = @transform_2, window_bounds = array<i64: 1, 64>}, {pipeline_mode = #tpu.pipeline_mode<synchronous>, transform_indices = @transform_3, window_bounds = array<i64: 1, 64>}, {pipeline_mode = #tpu.pipeline_mode<synchronous>, transform_indices = @transform_4, window_bounds = array<i64: 1, 64>}, {transform_indices = @transform_5, window_bounds = array<i64: 128, 64>}]} {
    %c0 = arith.constant 0 : index
    %c0_0 = arith.constant 0 : index
    %0 = vector.load %arg1[%c0, %c0_0] : memref<128x256xf32, #tpu.memory_space<vmem>>, vector<128x256xf32>
    %1 = arith.truncf %0 : vector<128x256xf32> to vector<128x256xbf16>
    %c0_1 = arith.constant 0 : index
    %c0_2 = arith.constant 0 : index
    %2 = vector.load %arg2[%c0_1, %c0_2] : memref<256x64xbf16, #tpu.memory_space<vmem>>, vector<256x64xbf16>
    %cst = arith.constant dense<0.000000e+00> : vector<128x64xf32>
    %3 = tpu.matmul %1, %2, %cst {dimension_numbers = #tpu.dot_dimension_numbers<[1], [0], [0], [1], [0, 0, 1, 1], [], []>} : vector<128x256xbf16>, vector<256x64xbf16>, vector<128x64xf32> -> vector<128x64xf32>
    %c0_3 = arith.constant 0 : index
    %c0_4 = arith.constant 0 : index
    %4 = vector.load %arg3[%c0_3, %c0_4] : memref<1x64xf32, #tpu.memory_space<vmem>>, vector<1x64xf32>
    %5 = vector.broadcast %4 : vector<1x64xf32> to vector<128x64xf32>
    %6 = arith.addf %3, %5 : vector<128x64xf32>
    %cst_5 = arith.constant dense<0.000000e+00> : vector<128xf32>
    %7 = vector.multi_reduction <add>, %6, %cst_5 [1] : vector<128x64xf32> to vector<128xf32>
    %8 = vector.shape_cast %7 : vector<128xf32> to vector<128x1xf32>
    %cst_6 = arith.constant 6.400000e+01 : f32
    %9 = vector.broadcast %cst_6 : f32 to vector<128x1xf32>
    %10 = arith.divf %8, %9 : vector<128x1xf32>
    %11 = vector.broadcast %10 : vector<128x1xf32> to vector<128x64xf32>
    %12 = arith.subf %6, %11 : vector<128x64xf32>
    %13 = arith.mulf %12, %12 : vector<128x64xf32>
    %cst_7 = arith.constant dense<0.000000e+00> : vector<128xf32>
    %14 = vector.multi_reduction <add>, %13, %cst_7 [1] : vector<128x64xf32> to vector<128xf32>
    %15 = vector.shape_cast %14 : vector<128xf32> to vector<128x1xf32>
    %cst_8 = arith.constant 6.400000e+01 : f32
    %16 = vector.broadcast %cst_8 : f32 to vector<128x1xf32>
    %17 = arith.divf %15, %16 : vector<128x1xf32>
    %cst_9 = arith.constant 9.99999974E-6 : f32
    %18 = vector.broadcast %cst_9 : f32 to vector<128x1xf32>
    %19 = arith.addf %17, %18 : vector<128x1xf32>
    %20 = math.rsqrt %19 : vector<128x1xf32>
    %21 = vector.broadcast %20 : vector<128x1xf32> to vector<128x64xf32>
    %22 = arith.mulf %12, %21 : vector<128x64xf32>
    %c0_10 = arith.constant 0 : index
    %c0_11 = arith.constant 0 : index
    %23 = vector.load %arg4[%c0_10, %c0_11] : memref<1x64xf32, #tpu.memory_space<vmem>>, vector<1x64xf32>
    %24 = vector.broadcast %23 : vector<1x64xf32> to vector<128x64xf32>
    %25 = arith.mulf %22, %24 : vector<128x64xf32>
    %c0_12 = arith.constant 0 : index
    %c0_13 = arith.constant 0 : index
    %26 = vector.load %arg5[%c0_12, %c0_13] : memref<1x64xf32, #tpu.memory_space<vmem>>, vector<1x64xf32>
    %27 = vector.broadcast %26 : vector<1x64xf32> to vector<128x64xf32>
    %28 = arith.addf %25, %27 : vector<128x64xf32>
    %c0_14 = arith.constant 0 : index
    %c0_15 = arith.constant 0 : index
    %29 = vector.load %arg6[%c0_14, %c0_15] : memref<128x64xf32, #tpu.memory_space<vmem>>, vector<128x64xf32>
    tpu.vector_store %arg6[%c0_14, %c0_15], %28 {strides = array<i32>} : memref<128x64xf32, #tpu.memory_space<vmem>>, vector<128x64xf32>,
    return
  }
  func.func @transform_0(%arg0: i32) -> (i32, i32) {
    %c0_i32 = arith.constant 0 : i32
    %c0_i32_0 = arith.constant 0 : i32
    return %arg0, %c0_i32 : i32, i32
  }
  func.func @transform_1(%arg0: i32) -> (i32, i32) {
    %c0_i32 = arith.constant 0 : i32
    %c0_i32_0 = arith.constant 0 : i32
    %c0_i32_1 = arith.constant 0 : i32
    return %c0_i32, %c0_i32_0 : i32, i32
  }
  func.func @transform_2(%arg0: i32) -> (i32, i32) {
    %c0_i32 = arith.constant 0 : i32
    %c0_i32_0 = arith.constant 0 : i32
    %c0_i32_1 = arith.constant 0 : i32
    return %c0_i32, %c0_i32_0 : i32, i32
  }
  func.func @transform_3(%arg0: i32) -> (i32, i32) {
    %c0_i32 = arith.constant 0 : i32
    %c0_i32_0 = arith.constant 0 : i32
    %c0_i32_1 = arith.constant 0 : i32
    return %c0_i32, %c0_i32_0 : i32, i32
  }
  func.func @transform_4(%arg0: i32) -> (i32, i32) {
    %c0_i32 = arith.constant 0 : i32
    %c0_i32_0 = arith.constant 0 : i32
    %c0_i32_1 = arith.constant 0 : i32
    return %c0_i32, %c0_i32_0 : i32, i32
  }
  func.func @transform_5(%arg0: i32) -> (i32, i32) {
    %c0_i32 = arith.constant 0 : i32
    %c0_i32_0 = arith.constant 0 : i32
    return %arg0, %c0_i32 : i32, i32
  }
}

</mosaic_0001>

<llo_original>
// kernel: tpu_custom_call.1
$region0: #{tpu_custom_call.1}
  #allocation0 [shape = 'u32[]', space=smem, size = 0x4, offset = 0x4, fixed_abs, tag = 'smem constant byte address 0x4 - core index']
  #allocation1 [shape = 'u32[72,128]{1,0:T(1,128)}', space=vmem, size = 0x9000, scoped, tag = 'internal scratch']
  %s0 = inlined_call_operand.hbm [shape: f32[128,256], index: 0, kind: input, shape index: {}]
  %s1 = inlined_call_operand.vmem [shape: bf16[256,64], index: 1, kind: input, shape index: {}]
  %s2 = inlined_call_operand.vmem [shape: f32[1,64], index: 2, kind: input, shape index: {}]
  %s3 = inlined_call_operand.vmem [shape: f32[1,64], index: 3, kind: input, shape index: {}]
  %s4 = inlined_call_operand.vmem [shape: f32[1,64], index: 4, kind: input, shape index: {}]
  %s5 = inlined_call_operand.vmem [shape: f32[128,64], index: 5, kind: output, shape index: {}]
  %s6 = sld [smem:[#allocation0]]
  $region34: #{tpu_custom_call.1} parent=0
    _
  %s8 = ssub.s32 1, %s6
  %s9 = scalar_select 0, %s8, %s6
  $region1: #{tpu_custom_call.1} parent=0
    #allocation2 [shape = 'u8[131072]{0}', space=vmem, size = 0x20000, scoped, tag = 'input window, operand 0, single buffered']
    #allocation3 [shape = 's32[1]{0}', space=sflag, size = 0x4, scoped, tag = 'scoped memory for tpu_custom_call.1']
    %10 = vsyncpa [#allocation3], 0
    // Predicated region
    $region2: #{tpu_custom_call.1} parent=1 // pred_check
      _
    $region3: #{tpu_custom_call.1} parent=1 // pred_check_branch
      %12 = sbr.rel (0) target = $region5
    $region4: #{tpu_custom_call.1} parent=1 // pred_region
      %14 = vsyncadd [#allocation3], 0
      %s15 = sshll.u32 %s0, 4
      %s16 = int_to_ptr.hbm [resolvable:$true] %s15
      %s17 = sshll.u32 [#allocation2], 4
      %s18 = int_to_ptr.vmem [resolvable:$true] %s17
      %23 = dma.hbm_to_vmem [thread:$0]  %s16, 4096, %s18, [#allocation3], 256, 256, 16
    $region5: #{tpu_custom_call.1} parent=1 // pred_fallthru
      _
    // Predicated region
    $region6: #{tpu_custom_call.1} parent=1 // pred_check
      _
    $region7: #{tpu_custom_call.1} parent=1 // pred_check_branch
      %25 = sbr.rel (0) target = $region9
    $region8: #{tpu_custom_call.1} parent=1 // pred_region
      _
    $region9: #{tpu_custom_call.1} parent=1 // pred_fallthru
      _
    // Predicated region
    $region10: #{tpu_custom_call.1} parent=1 // pred_check
      _
    $region11: #{tpu_custom_call.1} parent=1 // pred_check_branch
      %27 = sbr.rel (0) target = $region13
    $region12: #{tpu_custom_call.1} parent=1 // pred_region
      _
    $region13: #{tpu_custom_call.1} parent=1 // pred_fallthru
      _
    // Predicated region
    $region14: #{tpu_custom_call.1} parent=1 // pred_check
      _
    $region15: #{tpu_custom_call.1} parent=1 // pred_check_branch
      %29 = sbr.rel (0) target = $region17
    $region16: #{tpu_custom_call.1} parent=1 // pred_region
      _
    $region17: #{tpu_custom_call.1} parent=1 // pred_fallthru
      _
    // Predicated region
    $region18: #{tpu_custom_call.1} parent=1 // pred_check
      _
    $region19: #{tpu_custom_call.1} parent=1 // pred_check_branch
      %31 = sbr.rel (0) target = $region21
    $region20: #{tpu_custom_call.1} parent=1 // pred_region
      _
    $region21: #{tpu_custom_call.1} parent=1 // pred_fallthru
      _
    // Predicated region
    $region22: #{tpu_custom_call.1} parent=1 // pred_check
      _
    $region23: #{tpu_custom_call.1} parent=1 // pred_check_branch
      %33 = sbr.rel (0) target = $region25
    $region24: #{tpu_custom_call.1} parent=1 // pred_region
      %35 = dma.done [#allocation3], 4096
    $region25: #{tpu_custom_call.1} parent=1 // pred_fallthru
      _
    %v36 = vld [vmem:[#allocation2] sm:$0xff]
    %v37 = vld [vmem:[#allocation2 + $0x8] sm:$0xff]
    %v38 = vld [vmem:[#allocation2 + $0x10] sm:$0xff]
    %v39 = vld [vmem:[#allocation2 + $0x18] sm:$0xff]
    %v40 = vld [vmem:[#allocation2 + $0x20] sm:$0xff]
    %v41 = vld [vmem:[#allocation2 + $0x28] sm:$0xff]
    %v42 = vld [vmem:[#allocation2 + $0x30] sm:$0xff]
    %v43 = vld [vmem:[#allocation2 + $0x38] sm:$0xff]
    %v44 = vld [vmem:[#allocation2 + $0x40] sm:$0xff]
    %v45 = vld [vmem:[#allocation2 + $0x48] sm:$0xff]
    %v46 = vld [vmem:[#allocation2 + $0x50] sm:$0xff]
    %v47 = vld [vmem:[#allocation2 + $0x58] sm:$0xff]
    %v48 = vld [vmem:[#allocation2 + $0x60] sm:$0xff]
    %v49 = vld [vmem:[#allocation2 + $0x68] sm:$0xff]
    %v50 = vld [vmem:[#allocation2 + $0x70] sm:$0xff]
    %v51 = vld [vmem:[#allocation2 + $0x78] sm:$0xff]
    %v52 = vld [vmem:[#allocation2 + $0x80] sm:$0xff]
    %v53 = vld [vmem:[#allocation2 + $0x88] sm:$0xff]
    %v54 = vld [vmem:[#allocation2 + $0x90] sm:$0xff]
    %v55 = vld [vmem:[#allocation2 + $0x98] sm:$0xff]
    %v56 = vld [vmem:[#allocation2 + $0xa0] sm:$0xff]
    %v57 = vld [vmem:[#allocation2 + $0xa8] sm:$0xff]
    %v58 = vld [vmem:[#allocation2 + $0xb0] sm:$0xff]
    %v59 = vld [vmem:[#allocation2 + $0xb8] sm:$0xff]
    %v60 = vld [vmem:[#allocation2 + $0xc0] sm:$0xff]
    %v61 = vld [vmem:[#allocation2 + $0xc8] sm:$0xff]
    %v62 = vld [vmem:[#allocation2 + $0xd0] sm:$0xff]
    %v63 = vld [vmem:[#allocation2 + $0xd8] sm:$0xff]
    %v64 = vld [vmem:[#allocation2 + $0xe0] sm:$0xff]
    %v65 = vld [vmem:[#allocation2 + $0xe8] sm:$0xff]
    %v66 = vld [vmem:[#allocation2 + $0xf0] sm:$0xff]
    %v67 = vld [vmem:[#allocation2 + $0xf8] sm:$0xff]
    %v68 = vpack.c.bf16 %v38, %v36
    %v69 = vpack.c.bf16 %v39, %v37
    %v70 = vpack.c.bf16 %v42, %v40
    %v71 = vpack.c.bf16 %v43, %v41
    %v72 = vpack.c.bf16 %v46, %v44
    %v73 = vpack.c.bf16 %v47, %v45
    %v74 = vpack.c.bf16 %v50, %v48
    %v75 = vpack.c.bf16 %v51, %v49
    %v76 = vpack.c.bf16 %v54, %v52
    %v77 = vpack.c.bf16 %v55, %v53
    %v78 = vpack.c.bf16 %v58, %v56
    %v79 = vpack.c.bf16 %v59, %v57
    %v80 = vpack.c.bf16 %v62, %v60
    %v81 = vpack.c.bf16 %v63, %v61
    %v82 = vpack.c.bf16 %v66, %v64
    %v83 = vpack.c.bf16 %v67, %v65
    %v84 = vld [vmem:[%s1] sm:$0xf]
    %v85 = vld [vmem:[%s1 + $0x4] sm:$0xf]
    %v86 = vld [vmem:[%s1 + $0x8] sm:$0xf]
    %v87 = vld [vmem:[%s1 + $0xc] sm:$0xf]
    %v88 = vld [vmem:[%s1 + $0x10] sm:$0xf]
    %v89 = vld [vmem:[%s1 + $0x14] sm:$0xf]
    %v90 = vld [vmem:[%s1 + $0x18] sm:$0xf]
    %v91 = vld [vmem:[%s1 + $0x1c] sm:$0xf]
    %v92 = vld [vmem:[%s1 + $0x20] sm:$0xf]
    %v93 = vld [vmem:[%s1 + $0x24] sm:$0xf]
    %v94 = vld [vmem:[%s1 + $0x28] sm:$0xf]
    %v95 = vld [vmem:[%s1 + $0x2c] sm:$0xf]
    %v96 = vld [vmem:[%s1 + $0x30] sm:$0xf]
    %v97 = vld [vmem:[%s1 + $0x34] sm:$0xf]
    %v98 = vld [vmem:[%s1 + $0x38] sm:$0xf]
    %v99 = vld [vmem:[%s1 + $0x3c] sm:$0xf]
    %v100 = vld [vmem:[%s1 + $0x40] sm:$0xf]
    %v101 = vld [vmem:[%s1 + $0x44] sm:$0xf]
    %v102 = vld [vmem:[%s1 + $0x48] sm:$0xf]
    %v103 = vld [vmem:[%s1 + $0x4c] sm:$0xf]
    %v104 = vld [vmem:[%s1 + $0x50] sm:$0xf]
    %v105 = vld [vmem:[%s1 + $0x54] sm:$0xf]
    %v106 = vld [vmem:[%s1 + $0x58] sm:$0xf]
    %v107 = vld [vmem:[%s1 + $0x5c] sm:$0xf]
    %v108 = vld [vmem:[%s1 + $0x60] sm:$0xf]
    %v109 = vld [vmem:[%s1 + $0x64] sm:$0xf]
    %v110 = vld [vmem:[%s1 + $0x68] sm:$0xf]
    %v111 = vld [vmem:[%s1 + $0x6c] sm:$0xf]
    %v112 = vld [vmem:[%s1 + $0x70] sm:$0xf]
    %v113 = vld [vmem:[%s1 + $0x74] sm:$0xf]
    %v114 = vld [vmem:[%s1 + $0x78] sm:$0xf]
    %v115 = vld [vmem:[%s1 + $0x7c] sm:$0xf]
    %v116 = vld [vmem:[%s2] sm:$0x1]
    %v118 = vperm.slane %v116, 0
    %v152 = vunpack.c.l.b16 %v84
    %v153 = vunpack.c.l.b16 %v85
    %v154 = vunpack.c.l.b16 %v86
    %v155 = vunpack.c.l.b16 %v87
    %v156 = vunpack.c.l.b16 %v88
    %v157 = vunpack.c.l.b16 %v89
    %v158 = vunpack.c.l.b16 %v90
    %v159 = vunpack.c.l.b16 %v91
    %v160 = vunpack.c.l.b16 %v92
    %v161 = vunpack.c.l.b16 %v93
    %v162 = vunpack.c.l.b16 %v94
    %v163 = vunpack.c.l.b16 %v95
    %v164 = vunpack.c.l.b16 %v96
    %v165 = vunpack.c.l.b16 %v97
    %v166 = vunpack.c.l.b16 %v98
    %v167 = vunpack.c.l.b16 %v99
    %v168 = vunpack.c.l.b16 %v100
    %v169 = vunpack.c.l.b16 %v101
    %v170 = vunpack.c.l.b16 %v102
    %v171 = vunpack.c.l.b16 %v103
    %v172 = vunpack.c.l.b16 %v104
    %v173 = vunpack.c.l.b16 %v105
    %v174 = vunpack.c.l.b16 %v106
    %v175 = vunpack.c.l.b16 %v107
    %v176 = vunpack.c.l.b16 %v108
    %v177 = vunpack.c.l.b16 %v109
    %v178 = vunpack.c.l.b16 %v110
    %v179 = vunpack.c.l.b16 %v111
    %v180 = vunpack.c.l.b16 %v112
    %v181 = vunpack.c.l.b16 %v113
    %v182 = vunpack.c.l.b16 %v114
    %v183 = vunpack.c.l.b16 %v115
    %v184 = vpack.c.b16 %v153, %v152
    %v185 = vpack.c.b16 %v155, %v154
    %v186 = vpack.c.b16 %v157, %v156
    %v187 = vpack.c.b16 %v159, %v158
    %v188 = vpack.c.b16 %v161, %v160
    %v189 = vpack.c.b16 %v163, %v162
    %v190 = vpack.c.b16 %v165, %v164
    %v191 = vpack.c.b16 %v167, %v166
    %v192 = vpack.c.b16 %v169, %v168
    %v193 = vpack.c.b16 %v171, %v170
    %v194 = vpack.c.b16 %v173, %v172
    %v195 = vpack.c.b16 %v175, %v174
    %v196 = vpack.c.b16 %v177, %v176
    %v197 = vpack.c.b16 %v179, %v178
    %v198 = vpack.c.b16 %v181, %v180
    %v199 = vpack.c.b16 %v183, %v182
    %216 = vmatpush.bf16.msra.mxu0 %v191
    %217 = vmatpush.bf16.msra.mxu0 %v190
    %218 = vmatpush.bf16.msra.mxu0 %v189
    %219 = vmatpush.bf16.msra.mxu0 %v188
    %220 = vmatpush.bf16.msra.mxu0 %v187
    %221 = vmatpush.bf16.msra.mxu0 %v186
    %222 = vmatpush.bf16.msra.mxu0 %v185
    %223 = vmatpush.bf16.msra.mxu0 %v184
    %224 = vmatmul.bf16.gmra.mxu0 %v68
    %v225 = vpop.f32.mrf.mxu0
    %v226 = vadd.f32 %v118, %v225
    %v227 = vpop.f32.mrf.mxu0
    %v228 = vadd.f32 %v118, %v227
    %229 = vmatmul.bf16.gmra.mxu0 %v70
    %v230 = vpop.f32.mrf.mxu0
    %v231 = vadd.f32 %v118, %v230
    %v232 = vpop.f32.mrf.mxu0
    %v233 = vadd.f32 %v118, %v232
    %234 = vmatmul.bf16.gmra.mxu0 %v72
    %v235 = vpop.f32.mrf.mxu0
    %v236 = vadd.f32 %v118, %v235
    %v237 = vpop.f32.mrf.mxu0
    %v238 = vadd.f32 %v118, %v237
    %239 = vmatmul.bf16.gmra.mxu0 %v74
    %v240 = vpop.f32.mrf.mxu0
    %v241 = vadd.f32 %v118, %v240
    %v242 = vpop.f32.mrf.mxu0
    %v243 = vadd.f32 %v118, %v242
    %244 = vmatmul.bf16.gmra.mxu0 %v76
    %v245 = vpop.f32.mrf.mxu0
    %v246 = vadd.f32 %v118, %v245
    %v247 = vpop.f32.mrf.mxu0
    %v248 = vadd.f32 %v118, %v247
    %249 = vmatmul.bf16.gmra.mxu0 %v78
    %v250 = vpop.f32.mrf.mxu0
    %v251 = vadd.f32 %v118, %v250
    %v252 = vpop.f32.mrf.mxu0
    %v253 = vadd.f32 %v118, %v252
    %254 = vmatmul.bf16.gmra.mxu0 %v80
    %v255 = vpop.f32.mrf.mxu0
    %v256 = vadd.f32 %v118, %v255
    %v257 = vpop.f32.mrf.mxu0
    %v258 = vadd.f32 %v118, %v257
    %259 = vmatmul.bf16.gmra.mxu0 %v82
    %v260 = vpop.f32.mrf.mxu0
    %v261 = vadd.f32 %v118, %v260
    %v262 = vpop.f32.mrf.mxu0
    %v263 = vadd.f32 %v118, %v262
    %264 = vdwg.mxu0
    %265 = vmatpush.bf16.msra.mxu0 %v199
    %266 = vmatpush.bf16.msra.mxu0 %v198
    %267 = vmatpush.bf16.msra.mxu0 %v197
    %268 = vmatpush.bf16.msra.mxu0 %v196
    %269 = vmatpush.bf16.msra.mxu0 %v195
    %270 = vmatpush.bf16.msra.mxu0 %v194
    %271 = vmatpush.bf16.msra.mxu0 %v193
    %272 = vmatpush.bf16.msra.mxu0 %v192
    %273 = vmatmul.bf16.gmra.mxu0 %v69
    %v274 = vpop.f32.mrf.mxu0
    %v275 = vadd.f32 %v226, %v274
    %v276 = vpop.f32.mrf.mxu0
    %v277 = vadd.f32 %v228, %v276
    %278 = vmatmul.bf16.gmra.mxu0 %v71
    %v279 = vpop.f32.mrf.mxu0
    %v280 = vadd.f32 %v231, %v279
    %v281 = vpop.f32.mrf.mxu0
    %v282 = vadd.f32 %v233, %v281
    %283 = vmatmul.bf16.gmra.mxu0 %v73
    %v284 = vpop.f32.mrf.mxu0
    %v285 = vadd.f32 %v236, %v284
    %v286 = vpop.f32.mrf.mxu0
    %v287 = vadd.f32 %v238, %v286
    %288 = vmatmul.bf16.gmra.mxu0 %v75
    %v289 = vpop.f32.mrf.mxu0
    %v290 = vadd.f32 %v241, %v289
    %v291 = vpop.f32.mrf.mxu0
    %v292 = vadd.f32 %v243, %v291
    %293 = vmatmul.bf16.gmra.mxu0 %v77
    %v294 = vpop.f32.mrf.mxu0
    %v295 = vadd.f32 %v246, %v294
    %v296 = vpop.f32.mrf.mxu0
    %v297 = vadd.f32 %v248, %v296
    %298 = vmatmul.bf16.gmra.mxu0 %v79
    %v299 = vpop.f32.mrf.mxu0
    %v300 = vadd.f32 %v251, %v299
    %v301 = vpop.f32.mrf.mxu0
    %v302 = vadd.f32 %v253, %v301
    %303 = vmatmul.bf16.gmra.mxu0 %v81
    %v304 = vpop.f32.mrf.mxu0
    %v305 = vadd.f32 %v256, %v304
    %v306 = vpop.f32.mrf.mxu0
    %v307 = vadd.f32 %v258, %v306
    %308 = vmatmul.bf16.gmra.mxu0 %v83
    %v309 = vpop.f32.mrf.mxu0
    %v310 = vadd.f32 %v261, %v309
    %v311 = vpop.f32.mrf.mxu0
    %v312 = vadd.f32 %v263, %v311
    %313 = vdwg.mxu0
    %vm314 = vcmask 523264
    %v315 = vsel %vm314, %v275, 0.0
    %316 = vadd.xlane.f32.xlu0 %v315
    %v317 = vpop.xlane.xlu0 %316
    %v318 = vsel %vm314, %v277, 0.0
    %319 = vadd.xlane.f32.xlu0 %v318
    %v320 = vpop.xlane.xlu0 %319
    %v321 = vsel %vm314, %v280, 0.0
    %322 = vadd.xlane.f32.xlu0 %v321
    %v323 = vpop.xlane.xlu0 %322
    %v324 = vsel %vm314, %v282, 0.0
    %325 = vadd.xlane.f32.xlu0 %v324
    %v326 = vpop.xlane.xlu0 %325
    %v327 = vsel %vm314, %v285, 0.0
    %328 = vadd.xlane.f32.xlu0 %v327
    %v329 = vpop.xlane.xlu0 %328
    %v330 = vsel %vm314, %v287, 0.0
    %331 = vadd.xlane.f32.xlu0 %v330
    %v332 = vpop.xlane.xlu0 %331
    %v333 = vsel %vm314, %v290, 0.0
    %334 = vadd.xlane.f32.xlu0 %v333
    %v335 = vpop.xlane.xlu0 %334
    %v336 = vsel %vm314, %v292, 0.0
    %337 = vadd.xlane.f32.xlu0 %v336
    %v338 = vpop.xlane.xlu0 %337
    %v339 = vsel %vm314, %v295, 0.0
    %340 = vadd.xlane.f32.xlu0 %v339
    %v341 = vpop.xlane.xlu0 %340
    %v342 = vsel %vm314, %v297, 0.0
    %343 = vadd.xlane.f32.xlu0 %v342
    %v344 = vpop.xlane.xlu0 %343
    %v345 = vsel %vm314, %v300, 0.0
    %346 = vadd.xlane.f32.xlu0 %v345
    %v347 = vpop.xlane.xlu0 %346
    %v348 = vsel %vm314, %v302, 0.0
    %349 = vadd.xlane.f32.xlu0 %v348
    %v350 = vpop.xlane.xlu0 %349
    %v351 = vsel %vm314, %v305, 0.0
    %352 = vadd.xlane.f32.xlu0 %v351
    %v353 = vpop.xlane.xlu0 %352
    %v354 = vsel %vm314, %v307, 0.0
    %355 = vadd.xlane.f32.xlu0 %v354
    %v356 = vpop.xlane.xlu0 %355
    %v357 = vsel %vm314, %v310, 0.0
    %358 = vadd.xlane.f32.xlu0 %v357
    %v359 = vpop.xlane.xlu0 %358
    %v360 = vsel %vm314, %v312, 0.0
    %361 = vadd.xlane.f32.xlu0 %v360
    %v362 = vpop.xlane.xlu0 %361
    %v363 = vrcp.pop 64.0
    %v364 = vmul.f32 64.0, %v363
    %v365 = vsub.f32 1.0, %v364
    %v366 = vmul.f32 %v363, %v365
    %v367 = vadd.f32 %v363, %v366
    %vm368 = vweird.f32 %v363
    %v369 = vsel %vm368, %v363, %v367
    %v370 = vmul.f32 %v317, %v369
    %v371 = vmul.f32 %v320, %v369
    %v372 = vmul.f32 %v323, %v369
    %v373 = vmul.f32 %v326, %v369
    %v374 = vmul.f32 %v329, %v369
    %v375 = vmul.f32 %v332, %v369
    %v376 = vmul.f32 %v335, %v369
    %v377 = vmul.f32 %v338, %v369
    %v378 = vmul.f32 %v341, %v369
    %v379 = vmul.f32 %v344, %v369
    %v380 = vmul.f32 %v347, %v369
    %v381 = vmul.f32 %v350, %v369
    %v382 = vmul.f32 %v353, %v369
    %v383 = vmul.f32 %v356, %v369
    %v384 = vmul.f32 %v359, %v369
    %v385 = vmul.f32 %v362, %v369
    %v386 = vsub.f32 %v275, %v370
    %v387 = vsub.f32 %v277, %v371
    %v388 = vsub.f32 %v280, %v372
    %v389 = vsub.f32 %v282, %v373
    %v390 = vsub.f32 %v285, %v374
    %v391 = vsub.f32 %v287, %v375
    %v392 = vsub.f32 %v290, %v376
    %v393 = vsub.f32 %v292, %v377
    %v394 = vsub.f32 %v295, %v378
    %v395 = vsub.f32 %v297, %v379
    %v396 = vsub.f32 %v300, %v380
    %v397 = vsub.f32 %v302, %v381
    %v398 = vsub.f32 %v305, %v382
    %v399 = vsub.f32 %v307, %v383
    %v400 = vsub.f32 %v310, %v384
    %v401 = vsub.f32 %v312, %v385
    %v402 = vmul.f32 %v386, %v386
    %v403 = vmul.f32 %v387, %v387
    %v404 = vmul.f32 %v388, %v388
    %v405 = vmul.f32 %v389, %v389
    %v406 = vmul.f32 %v390, %v390
    %v407 = vmul.f32 %v391, %v391
    %v408 = vmul.f32 %v392, %v392
    %v409 = vmul.f32 %v393, %v393
    %v410 = vmul.f32 %v394, %v394
    %v411 = vmul.f32 %v395, %v395
    %v412 = vmul.f32 %v396, %v396
    %v413 = vmul.f32 %v397, %v397
    %v414 = vmul.f32 %v398, %v398
    %v415 = vmul.f32 %v399, %v399
    %v416 = vmul.f32 %v400, %v400
    %v417 = vmul.f32 %v401, %v401
    %v418 = vsel %vm314, %v402, 0.0
    %419 = vadd.xlane.f32.xlu0 %v418
    %v420 = vpop.xlane.xlu0 %419
    %v421 = vsel %vm314, %v403, 0.0
    %422 = vadd.xlane.f32.xlu0 %v421
    %v423 = vpop.xlane.xlu0 %422
    %v424 = vsel %vm314, %v404, 0.0
    %425 = vadd.xlane.f32.xlu0 %v424
    %v426 = vpop.xlane.xlu0 %425
    %v427 = vsel %vm314, %v405, 0.0
    %428 = vadd.xlane.f32.xlu0 %v427
    %v429 = vpop.xlane.xlu0 %428
    %v430 = vsel %vm314, %v406, 0.0
    %431 = vadd.xlane.f32.xlu0 %v430
    %v432 = vpop.xlane.xlu0 %431
    %v433 = vsel %vm314, %v407, 0.0
    %434 = vadd.xlane.f32.xlu0 %v433
    %v435 = vpop.xlane.xlu0 %434
    %v436 = vsel %vm314, %v408, 0.0
    %437 = vadd.xlane.f32.xlu0 %v436
    %v438 = vpop.xlane.xlu0 %437
    %v439 = vsel %vm314, %v409, 0.0
    %440 = vadd.xlane.f32.xlu0 %v439
    %v441 = vpop.xlane.xlu0 %440
    %v442 = vsel %vm314, %v410, 0.0
    %443 = vadd.xlane.f32.xlu0 %v442
    %v444 = vpop.xlane.xlu0 %443
    %v445 = vsel %vm314, %v411, 0.0
    %446 = vadd.xlane.f32.xlu0 %v445
    %v447 = vpop.xlane.xlu0 %446
    %v448 = vsel %vm314, %v412, 0.0
    %449 = vadd.xlane.f32.xlu0 %v448
    %v450 = vpop.xlane.xlu0 %449
    %v451 = vsel %vm314, %v413, 0.0
    %452 = vadd.xlane.f32.xlu0 %v451
    %v453 = vpop.xlane.xlu0 %452
    %v454 = vsel %vm314, %v414, 0.0
    %455 = vadd.xlane.f32.xlu0 %v454
    %v456 = vpop.xlane.xlu0 %455
    %v457 = vsel %vm314, %v415, 0.0
    %458 = vadd.xlane.f32.xlu0 %v457
    %v459 = vpop.xlane.xlu0 %458
    %v460 = vsel %vm314, %v416, 0.0
    %461 = vadd.xlane.f32.xlu0 %v460
    %v462 = vpop.xlane.xlu0 %461
    %v463 = vsel %vm314, %v417, 0.0
    %464 = vadd.xlane.f32.xlu0 %v463
    %v465 = vpop.xlane.xlu0 %464
    %v466 = vmul.f32 %v420, %v369
    %v467 = vmul.f32 %v423, %v369
    %v468 = vmul.f32 %v426, %v369
    %v469 = vmul.f32 %v429, %v369
    %v470 = vmul.f32 %v432, %v369
    %v471 = vmul.f32 %v435, %v369
    %v472 = vmul.f32 %v438, %v369
    %v473 = vmul.f32 %v441, %v369
    %v474 = vmul.f32 %v444, %v369
    %v475 = vmul.f32 %v447, %v369
    %v476 = vmul.f32 %v450, %v369
    %v477 = vmul.f32 %v453, %v369
    %v478 = vmul.f32 %v456, %v369
    %v479 = vmul.f32 %v459, %v369
    %v480 = vmul.f32 %v462, %v369
    %v481 = vmul.f32 %v465, %v369
    %v482 = vadd.f32 %v466, 1e-05
    %v483 = vadd.f32 %v467, 1e-05
    %v484 = vadd.f32 %v468, 1e-05
    %v485 = vadd.f32 %v469, 1e-05
    %v486 = vadd.f32 %v470, 1e-05
    %v487 = vadd.f32 %v471, 1e-05
    %v488 = vadd.f32 %v472, 1e-05
    %v489 = vadd.f32 %v473, 1e-05
    %v490 = vadd.f32 %v474, 1e-05
    %v491 = vadd.f32 %v475, 1e-05
    %v492 = vadd.f32 %v476, 1e-05
    %v493 = vadd.f32 %v477, 1e-05
    %v494 = vadd.f32 %v478, 1e-05
    %v495 = vadd.f32 %v479, 1e-05
    %v496 = vadd.f32 %v480, 1e-05
    %v497 = vadd.f32 %v481, 1e-05
    %v498 = vrsqrt.pop %v482
    %v499 = vmul.f32 %v498, %v482
    %v500 = vmul.f32 %v499, %v498
    %v501 = vmul.f32 0.5, %v500
    %v502 = vsub.f32 1.5, %v501
    %v503 = vmul.f32 %v498, %v502
    %vm504 = vweird.f32 %v482
    %vm505 = vweird.f32 %v498
    %vm506 = vmor %vm504, %vm505
    %v507 = vsel %vm506, %v498, %v503
    %v508 = vrsqrt.pop %v483
    %v509 = vmul.f32 %v508, %v483
    %v510 = vmul.f32 %v509, %v508
    %v511 = vmul.f32 0.5, %v510
    %v512 = vsub.f32 1.5, %v511
    %v513 = vmul.f32 %v508, %v512
    %vm514 = vweird.f32 %v483
    %vm515 = vweird.f32 %v508
    %vm516 = vmor %vm514, %vm515
    %v517 = vsel %vm516, %v508, %v513
    %v518 = vrsqrt.pop %v484
    %v519 = vmul.f32 %v518, %v484
    %v520 = vmul.f32 %v519, %v518
    %v521 = vmul.f32 0.5, %v520
    %v522 = vsub.f32 1.5, %v521
    %v523 = vmul.f32 %v518, %v522
    %vm524 = vweird.f32 %v484
    %vm525 = vweird.f32 %v518
    %vm526 = vmor %vm524, %vm525
    %v527 = vsel %vm526, %v518, %v523
    %v528 = vrsqrt.pop %v485
    %v529 = vmul.f32 %v528, %v485
    %v530 = vmul.f32 %v529, %v528
    %v531 = vmul.f32 0.5, %v530
    %v532 = vsub.f32 1.5, %v531
    %v533 = vmul.f32 %v528, %v532
    %vm534 = vweird.f32 %v485
    %vm535 = vweird.f32 %v528
    %vm536 = vmor %vm534, %vm535
    %v537 = vsel %vm536, %v528, %v533
    %v538 = vrsqrt.pop %v486
    %v539 = vmul.f32 %v538, %v486
    %v540 = vmul.f32 %v539, %v538
    %v541 = vmul.f32 0.5, %v540
    %v542 = vsub.f32 1.5, %v541
    %v543 = vmul.f32 %v538, %v542
    %vm544 = vweird.f32 %v486
    %vm545 = vweird.f32 %v538
    %vm546 = vmor %vm544, %vm545
    %v547 = vsel %vm546, %v538, %v543
    %v548 = vrsqrt.pop %v487
    %v549 = vmul.f32 %v548, %v487
    %v550 = vmul.f32 %v549, %v548
    %v551 = vmul.f32 0.5, %v550
    %v552 = vsub.f32 1.5, %v551
    %v553 = vmul.f32 %v548, %v552
    %vm554 = vweird.f32 %v487
    %vm555 = vweird.f32 %v548
    %vm556 = vmor %vm554, %vm555
    %v557 = vsel %vm556, %v548, %v553
    %v558 = vrsqrt.pop %v488
    %v559 = vmul.f32 %v558, %v488
    %v560 = vmul.f32 %v559, %v558
    %v561 = vmul.f32 0.5, %v560
    %v562 = vsub.f32 1.5, %v561
    %v563 = vmul.f32 %v558, %v562
    %vm564 = vweird.f32 %v488
    %vm565 = vweird.f32 %v558
    %vm566 = vmor %vm564, %vm565
    %v567 = vsel %vm566, %v558, %v563
    %v568 = vrsqrt.pop %v489
    %v569 = vmul.f32 %v568, %v489
    %v570 = vmul.f32 %v569, %v568
    %v571 = vmul.f32 0.5, %v570
    %v572 = vsub.f32 1.5, %v571
    %v573 = vmul.f32 %v568, %v572
    %vm574 = vweird.f32 %v489
    %vm575 = vweird.f32 %v568
    %vm576 = vmor %vm574, %vm575
    %v577 = vsel %vm576, %v568, %v573
    %v578 = vrsqrt.pop %v490
    %v579 = vmul.f32 %v578, %v490
    %v580 = vmul.f32 %v579, %v578
    %v581 = vmul.f32 0.5, %v580
    %v582 = vsub.f32 1.5, %v581
    %v583 = vmul.f32 %v578, %v582
    %vm584 = vweird.f32 %v490
    %vm585 = vweird.f32 %v578
    %vm586 = vmor %vm584, %vm585
    %v587 = vsel %vm586, %v578, %v583
    %v588 = vrsqrt.pop %v491
    %v589 = vmul.f32 %v588, %v491
    %v590 = vmul.f32 %v589, %v588
    %v591 = vmul.f32 0.5, %v590
    %v592 = vsub.f32 1.5, %v591
    %v593 = vmul.f32 %v588, %v592
    %vm594 = vweird.f32 %v491
    %vm595 = vweird.f32 %v588
    %vm596 = vmor %vm594, %vm595
    %v597 = vsel %vm596, %v588, %v593
    %v598 = vrsqrt.pop %v492
    %v599 = vmul.f32 %v598, %v492
    %v600 = vmul.f32 %v599, %v598
    %v601 = vmul.f32 0.5, %v600
    %v602 = vsub.f32 1.5, %v601
    %v603 = vmul.f32 %v598, %v602
    %vm604 = vweird.f32 %v492
    %vm605 = vweird.f32 %v598
    %vm606 = vmor %vm604, %vm605
    %v607 = vsel %vm606, %v598, %v603
    %v608 = vrsqrt.pop %v493
    %v609 = vmul.f32 %v608, %v493
    %v610 = vmul.f32 %v609, %v608
    %v611 = vmul.f32 0.5, %v610
    %v612 = vsub.f32 1.5, %v611
    %v613 = vmul.f32 %v608, %v612
    %vm614 = vweird.f32 %v493
    %vm615 = vweird.f32 %v608
    %vm616 = vmor %vm614, %vm615
    %v617 = vsel %vm616, %v608, %v613
    %v618 = vrsqrt.pop %v494
    %v619 = vmul.f32 %v618, %v494
    %v620 = vmul.f32 %v619, %v618
    %v621 = vmul.f32 0.5, %v620
    %v622 = vsub.f32 1.5, %v621
    %v623 = vmul.f32 %v618, %v622
    %vm624 = vweird.f32 %v494
    %vm625 = vweird.f32 %v618
    %vm626 = vmor %vm624, %vm625
    %v627 = vsel %vm626, %v618, %v623
    %v628 = vrsqrt.pop %v495
    %v629 = vmul.f32 %v628, %v495
    %v630 = vmul.f32 %v629, %v628
    %v631 = vmul.f32 0.5, %v630
    %v632 = vsub.f32 1.5, %v631
    %v633 = vmul.f32 %v628, %v632
    %vm634 = vweird.f32 %v495
    %vm635 = vweird.f32 %v628
    %vm636 = vmor %vm634, %vm635
    %v637 = vsel %vm636, %v628, %v633
    %v638 = vrsqrt.pop %v496
    %v639 = vmul.f32 %v638, %v496
    %v640 = vmul.f32 %v639, %v638
    %v641 = vmul.f32 0.5, %v640
    %v642 = vsub.f32 1.5, %v641
    %v643 = vmul.f32 %v638, %v642
    %vm644 = vweird.f32 %v496
    %vm645 = vweird.f32 %v638
    %vm646 = vmor %vm644, %vm645
    %v647 = vsel %vm646, %v638, %v643
    %v648 = vrsqrt.pop %v497
    %v649 = vmul.f32 %v648, %v497
    %v650 = vmul.f32 %v649, %v648
    %v651 = vmul.f32 0.5, %v650
    %v652 = vsub.f32 1.5, %v651
    %v653 = vmul.f32 %v648, %v652
    %vm654 = vweird.f32 %v497
    %vm655 = vweird.f32 %v648
    %vm656 = vmor %vm654, %vm655
    %v657 = vsel %vm656, %v648, %v653
    %v658 = vmul.f32 %v386, %v507
    %v659 = vmul.f32 %v387, %v517
    %v660 = vmul.f32 %v388, %v527
    %v661 = vmul.f32 %v389, %v537
    %v662 = vmul.f32 %v390, %v547
    %v663 = vmul.f32 %v391, %v557
    %v664 = vmul.f32 %v392, %v567
    %v665 = vmul.f32 %v393, %v577
    %v666 = vmul.f32 %v394, %v587
    %v667 = vmul.f32 %v395, %v597
    %v668 = vmul.f32 %v396, %v607
    %v669 = vmul.f32 %v397, %v617
    %v670 = vmul.f32 %v398, %v627
    %v671 = vmul.f32 %v399, %v637
    %v672 = vmul.f32 %v400, %v647
    %v673 = vmul.f32 %v401, %v657
    %v674 = vld [vmem:[%s3] sm:$0x1]
    %v676 = vperm.slane %v674, 0
    %v678 = vmul.f32 %v658, %v676
    %v679 = vmul.f32 %v659, %v676
    %v680 = vmul.f32 %v660, %v676
    %v681 = vmul.f32 %v661, %v676
    %v682 = vmul.f32 %v662, %v676
    %v683 = vmul.f32 %v663, %v676
    %v684 = vmul.f32 %v664, %v676
    %v685 = vmul.f32 %v665, %v676
    %v686 = vmul.f32 %v666, %v676
    %v687 = vmul.f32 %v667, %v676
    %v688 = vmul.f32 %v668, %v676
    %v689 = vmul.f32 %v669, %v676
    %v690 = vmul.f32 %v670, %v676
    %v691 = vmul.f32 %v671, %v676
    %v692 = vmul.f32 %v672, %v676
    %v693 = vmul.f32 %v673, %v676
    %v694 = vld [vmem:[%s4] sm:$0x1]
    %v696 = vperm.slane %v694, 0
    %v698 = vadd.f32 %v678, %v696
    %v699 = vadd.f32 %v679, %v696
    %v700 = vadd.f32 %v680, %v696
    %v701 = vadd.f32 %v681, %v696
    %v702 = vadd.f32 %v682, %v696
    %v703 = vadd.f32 %v683, %v696
    %v704 = vadd.f32 %v684, %v696
    %v705 = vadd.f32 %v685, %v696
    %v706 = vadd.f32 %v686, %v696
    %v707 = vadd.f32 %v687, %v696
    %v708 = vadd.f32 %v688, %v696
    %v709 = vadd.f32 %v689, %v696
    %v710 = vadd.f32 %v690, %v696
    %v711 = vadd.f32 %v691, %v696
    %v712 = vadd.f32 %v692, %v696
    %v713 = vadd.f32 %v693, %v696
    %714 = vst.msk [vmem:[%s5] sm:$0xff] %vm314, %v698
    %715 = vst.msk [vmem:[%s5 + $0x8] sm:$0xff] %vm314, %v699
    %716 = vst.msk [vmem:[%s5 + $0x10] sm:$0xff] %vm314, %v700
    %717 = vst.msk [vmem:[%s5 + $0x18] sm:$0xff] %vm314, %v701
    %718 = vst.msk [vmem:[%s5 + $0x20] sm:$0xff] %vm314, %v702
    %719 = vst.msk [vmem:[%s5 + $0x28] sm:$0xff] %vm314, %v703
    %720 = vst.msk [vmem:[%s5 + $0x30] sm:$0xff] %vm314, %v704
    %721 = vst.msk [vmem:[%s5 + $0x38] sm:$0xff] %vm314, %v705
    %722 = vst.msk [vmem:[%s5 + $0x40] sm:$0xff] %vm314, %v706
    %723 = vst.msk [vmem:[%s5 + $0x48] sm:$0xff] %vm314, %v707
    %724 = vst.msk [vmem:[%s5 + $0x50] sm:$0xff] %vm314, %v708
    %725 = vst.msk [vmem:[%s5 + $0x58] sm:$0xff] %vm314, %v709
    %726 = vst.msk [vmem:[%s5 + $0x60] sm:$0xff] %vm314, %v710
    %727 = vst.msk [vmem:[%s5 + $0x68] sm:$0xff] %vm314, %v711
    %728 = vst.msk [vmem:[%s5 + $0x70] sm:$0xff] %vm314, %v712
    %729 = vst.msk [vmem:[%s5 + $0x78] sm:$0xff] %vm314, %v713
    // Predicated region
    $region26: #{tpu_custom_call.1} parent=1 // pred_check
      _
    $region27: #{tpu_custom_call.1} parent=1 // pred_check_branch
      %731 = sbr.rel (0) target = $region29
    $region28: #{tpu_custom_call.1} parent=1 // pred_region
      _
    $region29: #{tpu_custom_call.1} parent=1 // pred_fallthru
      _
    // Predicated region
    $region30: #{tpu_custom_call.1} parent=1 // pred_check
      _
    $region31: #{tpu_custom_call.1} parent=1 // pred_check_branch
      %733 = sbr.rel (0) target = $region33
    $region32: #{tpu_custom_call.1} parent=1 // pred_region
      _
    $region33: #{tpu_custom_call.1} parent=1 // pred_fallthru
      _
    %734 = vsyncpa [#allocation3], 1

</llo_original>
